<compile_context>
chip_gen: v6e
topology: v6e:2x2x1
jax: 0.10.0
libtpu: 0.0.40
codegen_flags: <defaults>
</compile_context>

<pallas_src>
import jax
import jax.numpy as jnp
from jax.experimental import pallas as pl
from jax.experimental.pallas import tpu as pltpu


def _round_up(v, m):
    return ((v + m - 1) // m) * m


def _fused_mlp_kernel(x_ref, w1t_ref, b1c_ref, w2t_ref, b2_ref, o_ref):
    # x_ref   : (tb, 3)  natural-layout activations (batch on sublanes)
    # w1t_ref : (3, 9)   linear1 weight, transposed to (in, out)
    # b1c_ref : (1, 9)   linear1 bias with the constant subtraction pre-folded
    # w2t_ref : (9, 4)   linear2 weight, transposed to (in, out)
    # b2_ref  : (1, 4)   linear2 bias
    # o_ref   : (tb, 4)  natural-layout output
    x = x_ref[...]
    w1t = w1t_ref[...]
    w2t = w2t_ref[...]

    # Layer 1 (+ folded constant subtraction): contraction dim is only 3,
    # so 3 broadcast multiply-adds; bias seeds the accumulator.
    acc1 = b1c_ref[...] + x[:, 0:1] * w1t[0:1, :]
    for k in range(1, 3):
        acc1 = acc1 + x[:, k:k + 1] * w1t[k:k + 1, :]
    r = jnp.maximum(acc1, 0.0)                       # relu(v1 - const), (tb, 9)

    # Layer 2: contraction dim 9 -> 9 broadcast multiply-adds.
    acc2 = b2_ref[...] + r[:, 0:1] * w2t[0:1, :]
    for j in range(1, 9):
        acc2 = acc2 + r[:, j:j + 1] * w2t[j:j + 1, :]
    o_ref[...] = acc2


def fused_mlp(x, w1, b1, c, w2, b2, *, max_tb=4096):
    """x: (B, 3) f32 -> (B, 4) f32, fused linear -> sub -> relu -> linear."""
    B = x.shape[0]

    # Tile selection:
    #  - big tiles amortize ~0.35 us/step grid overhead,
    #  - but natural-layout (tb,3)/(tb,4) blocks lane-pad to 512 B/row in VMEM,
    #    so cap at max_tb=4096 rows (~14 MiB double-buffered working set),
    #  - and when B is large enough, pick tb so there are >=2 blocks for the
    #    two v7x TensorCores (near no-op on 1-TC v5e/v6e).
    if B <= 16:
        tb = B                                        # single block == full dims
    else:
        tb = min(max_tb, _round_up(pl.cdiv(B, 2), 8))  # 8-sublane aligned
    grid = (pl.cdiv(B, tb),)

    # Tiny one-time weight prep (negligible HBM traffic).
    w1t = jnp.asarray(w1, jnp.float32).T              # (3, 9)
    w2t = jnp.asarray(w2, jnp.float32).T              # (9, 4)
    b1c = (b1 - c).reshape(1, 9).astype(jnp.float32)  # fold const sub into bias
    b2r = jnp.asarray(b2, jnp.float32).reshape(1, 4)

    return pl.pallas_call(
        _fused_mlp_kernel,
        out_shape=jax.ShapeDtypeStruct((B, 4), jnp.float32),
        grid=grid,
        in_specs=[
            pl.BlockSpec((tb, 3), lambda i: (i, 0)),   # activations, tiled batch
            pl.BlockSpec((3, 9), lambda i: (0, 0)),    # weights VMEM-resident
            pl.BlockSpec((1, 9), lambda i: (0, 0)),
            pl.BlockSpec((9, 4), lambda i: (0, 0)),
            pl.BlockSpec((1, 4), lambda i: (0, 0)),
        ],
        out_specs=pl.BlockSpec((tb, 4), lambda i: (i, 0)),
        compiler_params=pltpu.CompilerParams(
            dimension_semantics=("parallel",)),        # batch axis -> 2 TCs on v7x
    )(x.astype(jnp.float32), w1t, b1c, w2t, b2r)


def make_params():
    """Deterministic parameter init (matches PyTorch Linear shapes, (out, in))."""
    key = jax.random.PRNGKey(42)
    k1, k2, k3, k4 = jax.random.split(key, 4)
    bound1 = 1.0 / jnp.sqrt(3.0)
    w1 = jax.random.uniform(k1, (9, 3), jnp.float32, -bound1, bound1)
    b1 = jax.random.uniform(k2, (9,), jnp.float32, -bound1, bound1)
    bound2 = 1.0 / jnp.sqrt(9.0)
    w2 = jax.random.uniform(k3, (4, 9), jnp.float32, -bound2, bound2)
    b2 = jax.random.uniform(k4, (4,), jnp.float32, -bound2, bound2)
    # Original constant [1.2, 2.3, 3.4, 4.5] cyclically tiled to 9 features.
    base = jnp.array([1.2, 2.3, 3.4, 4.5], dtype=jnp.float32)
    c = jnp.tile(base, 3)[:9]
    return w1, b1, c, w2, b2


def reference(x, w1, b1, c, w2, b2):
    v1 = x @ w1.T + b1
    v2 = v1 - c
    return jnp.maximum(v2, 0.0) @ w2.T + b2


if __name__ == "__main__":
    w1, b1, c, w2, b2 = make_params()

    # Batched case: B deliberately not a tile multiple -> exercises the
    # 2-block grid (one per v7x TC) and the masked partial last block.
    B = 200
    x = jax.random.normal(jax.random.PRNGKey(0), (B, 3), dtype=jnp.float32)
    out = jax.block_until_ready(fused_mlp(x, w1, b1, c, w2, b2))
    ref = reference(x, w1, b1, c, w2, b2)
    assert out.shape == (B, 4)
    assert jnp.allclose(out, ref, atol=1e-5, rtol=1e-5), (out, ref)

    # Original module shape (1, 3).  (For true B=1 deployment, plain jitted
    # XLA beats any Pallas launch; kept here for shape-compatibility check.)
    x1 = jax.random.normal(jax.random.PRNGKey(1), (1, 3), dtype=jnp.float32)
    out1 = jax.block_until_ready(fused_mlp(x1, w1, b1, c, w2, b2))
    ref1 = reference(x1, w1, b1, c, w2, b2)
    assert out1.shape == (1, 4)
    assert jnp.allclose(out1, ref1, atol=1e-5, rtol=1e-5), (out1, ref1)

    print("KERNEL_OK")
</pallas_src>

<mosaic_0001>
module attributes {stable_mosaic.version = 11 : i64} {
  func.func @_fused_mlp_kernel(%arg0: i32, %arg1: memref<104x3xf32, #tpu.memory_space<vmem>>, %arg2: memref<3x9xf32, #tpu.memory_space<vmem>>, %arg3: memref<1x9xf32, #tpu.memory_space<vmem>>, %arg4: memref<9x4xf32, #tpu.memory_space<vmem>>, %arg5: memref<1x4xf32, #tpu.memory_space<vmem>>, %arg6: memref<104x4xf32, #tpu.memory_space<vmem>>) attributes {dimension_semantics = [#tpu.dimension_semantics<parallel>], iteration_bounds = array<i64: 2>, scalar_prefetch = 0 : i64, scratch_operands = 0 : i64, tpu.core_type = #tpu.core_type<tc>, window_params = [{transform_indices = @transform_0, window_bounds = array<i64: 104, 3>}, {pipeline_mode = #tpu.pipeline_mode<synchronous>, transform_indices = @transform_1, window_bounds = array<i64: 3, 9>}, {pipeline_mode = #tpu.pipeline_mode<synchronous>, transform_indices = @transform_2, window_bounds = array<i64: 1, 9>}, {pipeline_mode = #tpu.pipeline_mode<synchronous>, transform_indices = @transform_3, window_bounds = array<i64: 9, 4>}, {pipeline_mode = #tpu.pipeline_mode<synchronous>, transform_indices = @transform_4, window_bounds = array<i64: 1, 4>}, {transform_indices = @transform_5, window_bounds = array<i64: 104, 4>}]} {
    %c0 = arith.constant 0 : index
    %c0_0 = arith.constant 0 : index
    %0 = vector.load %arg1[%c0, %c0_0] : memref<104x3xf32, #tpu.memory_space<vmem>>, vector<104x3xf32>
    %c0_1 = arith.constant 0 : index
    %c0_2 = arith.constant 0 : index
    %1 = vector.load %arg2[%c0_1, %c0_2] : memref<3x9xf32, #tpu.memory_space<vmem>>, vector<3x9xf32>
    %c0_3 = arith.constant 0 : index
    %c0_4 = arith.constant 0 : index
    %2 = vector.load %arg4[%c0_3, %c0_4] : memref<9x4xf32, #tpu.memory_space<vmem>>, vector<9x4xf32>
    %c0_5 = arith.constant 0 : index
    %c0_6 = arith.constant 0 : index
    %3 = vector.load %arg3[%c0_5, %c0_6] : memref<1x9xf32, #tpu.memory_space<vmem>>, vector<1x9xf32>
    %4 = vector.extract_strided_slice %0 {offsets = [0, 0], sizes = [104, 1], strides = [1, 1]} : vector<104x3xf32> to vector<104x1xf32>
    %5 = vector.extract_strided_slice %1 {offsets = [0, 0], sizes = [1, 9], strides = [1, 1]} : vector<3x9xf32> to vector<1x9xf32>
    %6 = vector.broadcast %4 : vector<104x1xf32> to vector<104x9xf32>
    %7 = vector.broadcast %5 : vector<1x9xf32> to vector<104x9xf32>
    %8 = arith.mulf %6, %7 : vector<104x9xf32>
    %9 = vector.broadcast %3 : vector<1x9xf32> to vector<104x9xf32>
    %10 = arith.addf %9, %8 : vector<104x9xf32>
    %11 = vector.extract_strided_slice %0 {offsets = [0, 1], sizes = [104, 1], strides = [1, 1]} : vector<104x3xf32> to vector<104x1xf32>
    %12 = vector.extract_strided_slice %1 {offsets = [1, 0], sizes = [1, 9], strides = [1, 1]} : vector<3x9xf32> to vector<1x9xf32>
    %13 = vector.broadcast %11 : vector<104x1xf32> to vector<104x9xf32>
    %14 = vector.broadcast %12 : vector<1x9xf32> to vector<104x9xf32>
    %15 = arith.mulf %13, %14 : vector<104x9xf32>
    %16 = arith.addf %10, %15 : vector<104x9xf32>
    %17 = vector.extract_strided_slice %0 {offsets = [0, 2], sizes = [104, 1], strides = [1, 1]} : vector<104x3xf32> to vector<104x1xf32>
    %18 = vector.extract_strided_slice %1 {offsets = [2, 0], sizes = [1, 9], strides = [1, 1]} : vector<3x9xf32> to vector<1x9xf32>
    %19 = vector.broadcast %17 : vector<104x1xf32> to vector<104x9xf32>
    %20 = vector.broadcast %18 : vector<1x9xf32> to vector<104x9xf32>
    %21 = arith.mulf %19, %20 : vector<104x9xf32>
    %22 = arith.addf %16, %21 : vector<104x9xf32>
    %cst = arith.constant 0.000000e+00 : f32
    %23 = vector.broadcast %cst : f32 to vector<104x9xf32>
    %24 = arith.maximumf %22, %23 : vector<104x9xf32>
    %c0_7 = arith.constant 0 : index
    %c0_8 = arith.constant 0 : index
    %25 = vector.load %arg5[%c0_7, %c0_8] : memref<1x4xf32, #tpu.memory_space<vmem>>, vector<1x4xf32>
    %26 = vector.extract_strided_slice %24 {offsets = [0, 0], sizes = [104, 1], strides = [1, 1]} : vector<104x9xf32> to vector<104x1xf32>
    %27 = vector.extract_strided_slice %2 {offsets = [0, 0], sizes = [1, 4], strides = [1, 1]} : vector<9x4xf32> to vector<1x4xf32>
    %28 = vector.broadcast %26 : vector<104x1xf32> to vector<104x4xf32>
    %29 = vector.broadcast %27 : vector<1x4xf32> to vector<104x4xf32>
    %30 = arith.mulf %28, %29 : vector<104x4xf32>
    %31 = vector.broadcast %25 : vector<1x4xf32> to vector<104x4xf32>
    %32 = arith.addf %31, %30 : vector<104x4xf32>
    %33 = vector.extract_strided_slice %24 {offsets = [0, 1], sizes = [104, 1], strides = [1, 1]} : vector<104x9xf32> to vector<104x1xf32>
    %34 = vector.extract_strided_slice %2 {offsets = [1, 0], sizes = [1, 4], strides = [1, 1]} : vector<9x4xf32> to vector<1x4xf32>
    %35 = vector.broadcast %33 : vector<104x1xf32> to vector<104x4xf32>
    %36 = vector.broadcast %34 : vector<1x4xf32> to vector<104x4xf32>
    %37 = arith.mulf %35, %36 : vector<104x4xf32>
    %38 = arith.addf %32, %37 : vector<104x4xf32>
    %39 = vector.extract_strided_slice %24 {offsets = [0, 2], sizes = [104, 1], strides = [1, 1]} : vector<104x9xf32> to vector<104x1xf32>
    %40 = vector.extract_strided_slice %2 {offsets = [2, 0], sizes = [1, 4], strides = [1, 1]} : vector<9x4xf32> to vector<1x4xf32>
    %41 = vector.broadcast %39 : vector<104x1xf32> to vector<104x4xf32>
    %42 = vector.broadcast %40 : vector<1x4xf32> to vector<104x4xf32>
    %43 = arith.mulf %41, %42 : vector<104x4xf32>
    %44 = arith.addf %38, %43 : vector<104x4xf32>
    %45 = vector.extract_strided_slice %24 {offsets = [0, 3], sizes = [104, 1], strides = [1, 1]} : vector<104x9xf32> to vector<104x1xf32>
    %46 = vector.extract_strided_slice %2 {offsets = [3, 0], sizes = [1, 4], strides = [1, 1]} : vector<9x4xf32> to vector<1x4xf32>
    %47 = vector.broadcast %45 : vector<104x1xf32> to vector<104x4xf32>
    %48 = vector.broadcast %46 : vector<1x4xf32> to vector<104x4xf32>
    %49 = arith.mulf %47, %48 : vector<104x4xf32>
    %50 = arith.addf %44, %49 : vector<104x4xf32>
    %51 = vector.extract_strided_slice %24 {offsets = [0, 4], sizes = [104, 1], strides = [1, 1]} : vector<104x9xf32> to vector<104x1xf32>
    %52 = vector.extract_strided_slice %2 {offsets = [4, 0], sizes = [1, 4], strides = [1, 1]} : vector<9x4xf32> to vector<1x4xf32>
    %53 = vector.broadcast %51 : vector<104x1xf32> to vector<104x4xf32>
    %54 = vector.broadcast %52 : vector<1x4xf32> to vector<104x4xf32>
    %55 = arith.mulf %53, %54 : vector<104x4xf32>
    %56 = arith.addf %50, %55 : vector<104x4xf32>
    %57 = vector.extract_strided_slice %24 {offsets = [0, 5], sizes = [104, 1], strides = [1, 1]} : vector<104x9xf32> to vector<104x1xf32>
    %58 = vector.extract_strided_slice %2 {offsets = [5, 0], sizes = [1, 4], strides = [1, 1]} : vector<9x4xf32> to vector<1x4xf32>
    %59 = vector.broadcast %57 : vector<104x1xf32> to vector<104x4xf32>
    %60 = vector.broadcast %58 : vector<1x4xf32> to vector<104x4xf32>
    %61 = arith.mulf %59, %60 : vector<104x4xf32>
    %62 = arith.addf %56, %61 : vector<104x4xf32>
    %63 = vector.extract_strided_slice %24 {offsets = [0, 6], sizes = [104, 1], strides = [1, 1]} : vector<104x9xf32> to vector<104x1xf32>
    %64 = vector.extract_strided_slice %2 {offsets = [6, 0], sizes = [1, 4], strides = [1, 1]} : vector<9x4xf32> to vector<1x4xf32>
    %65 = vector.broadcast %63 : vector<104x1xf32> to vector<104x4xf32>
    %66 = vector.broadcast %64 : vector<1x4xf32> to vector<104x4xf32>
    %67 = arith.mulf %65, %66 : vector<104x4xf32>
    %68 = arith.addf %62, %67 : vector<104x4xf32>
    %69 = vector.extract_strided_slice %24 {offsets = [0, 7], sizes = [104, 1], strides = [1, 1]} : vector<104x9xf32> to vector<104x1xf32>
    %70 = vector.extract_strided_slice %2 {offsets = [7, 0], sizes = [1, 4], strides = [1, 1]} : vector<9x4xf32> to vector<1x4xf32>
    %71 = vector.broadcast %69 : vector<104x1xf32> to vector<104x4xf32>
    %72 = vector.broadcast %70 : vector<1x4xf32> to vector<104x4xf32>
    %73 = arith.mulf %71, %72 : vector<104x4xf32>
    %74 = arith.addf %68, %73 : vector<104x4xf32>
    %75 = vector.extract_strided_slice %24 {offsets = [0, 8], sizes = [104, 1], strides = [1, 1]} : vector<104x9xf32> to vector<104x1xf32>
    %76 = vector.extract_strided_slice %2 {offsets = [8, 0], sizes = [1, 4], strides = [1, 1]} : vector<9x4xf32> to vector<1x4xf32>
    %77 = vector.broadcast %75 : vector<104x1xf32> to vector<104x4xf32>
    %78 = vector.broadcast %76 : vector<1x4xf32> to vector<104x4xf32>
    %79 = arith.mulf %77, %78 : vector<104x4xf32>
    %80 = arith.addf %74, %79 : vector<104x4xf32>
    %c0_9 = arith.constant 0 : index
    %c0_10 = arith.constant 0 : index
    %81 = vector.load %arg6[%c0_9, %c0_10] : memref<104x4xf32, #tpu.memory_space<vmem>>, vector<104x4xf32>
    tpu.vector_store %arg6[%c0_9, %c0_10], %80 {strides = array<i32>} : memref<104x4xf32, #tpu.memory_space<vmem>>, vector<104x4xf32>,
    return
  }
  func.func @transform_0(%arg0: i32) -> (i32, i32) {
    %c0_i32 = arith.constant 0 : i32
    %c0_i32_0 = arith.constant 0 : i32
    return %arg0, %c0_i32 : i32, i32
  }
  func.func @transform_1(%arg0: i32) -> (i32, i32) {
    %c0_i32 = arith.constant 0 : i32
    %c0_i32_0 = arith.constant 0 : i32
    %c0_i32_1 = arith.constant 0 : i32
    return %c0_i32, %c0_i32_0 : i32, i32
  }
  func.func @transform_2(%arg0: i32) -> (i32, i32) {
    %c0_i32 = arith.constant 0 : i32
    %c0_i32_0 = arith.constant 0 : i32
    %c0_i32_1 = arith.constant 0 : i32
    return %c0_i32, %c0_i32_0 : i32, i32
  }
  func.func @transform_3(%arg0: i32) -> (i32, i32) {
    %c0_i32 = arith.constant 0 : i32
    %c0_i32_0 = arith.constant 0 : i32
    %c0_i32_1 = arith.constant 0 : i32
    return %c0_i32, %c0_i32_0 : i32, i32
  }
  func.func @transform_4(%arg0: i32) -> (i32, i32) {
    %c0_i32 = arith.constant 0 : i32
    %c0_i32_0 = arith.constant 0 : i32
    %c0_i32_1 = arith.constant 0 : i32
    return %c0_i32, %c0_i32_0 : i32, i32
  }
  func.func @transform_5(%arg0: i32) -> (i32, i32) {
    %c0_i32 = arith.constant 0 : i32
    %c0_i32_0 = arith.constant 0 : i32
    return %arg0, %c0_i32 : i32, i32
  }
}

</mosaic_0001>

<llo_original>
// kernel: tpu_custom_call.1
$region0: #{tpu_custom_call.1}
  #allocation0 [shape = 'u32[]', space=smem, size = 0x4, offset = 0x4, fixed_abs, tag = 'smem constant byte address 0x4 - core index']
  #allocation1 [shape = 'u32[144,128]{1,0:T(1,128)}', space=vmem, size = 0x12000, scoped, tag = 'internal scratch']
  %s0 = inlined_call_operand.vmem [shape: f32[200,3], index: 0, kind: input, shape index: {}]
  %s1 = inlined_call_operand.vmem [shape: f32[3,9], index: 1, kind: input, shape index: {}]
  %s2 = inlined_call_operand.vmem [shape: f32[1,9], index: 2, kind: input, shape index: {}]
  %s3 = inlined_call_operand.vmem [shape: f32[9,4], index: 3, kind: input, shape index: {}]
  %s4 = inlined_call_operand.vmem [shape: f32[1,4], index: 4, kind: input, shape index: {}]
  %s5 = inlined_call_operand.vmem [shape: f32[200,4], index: 5, kind: output, shape index: {}]
  %s6 = sld [smem:[#allocation0]]
  $region101: #{tpu_custom_call.1} parent=0
    _
  %s8 = ssub.s32 1, %s6
  %s9 = scalar_select 0, %s8, %s6
  $region1: #{tpu_custom_call.1} parent=0
    #allocation2 [shape = 'u8[106496]{0}', space=vmem, size = 0x1a000, scoped, tag = 'output window, operand 0']
    loop: start=0, step=1, limit=4
    $region2: #{tpu_custom_call.1} parent=1 // loop_pre_header
      _
    $region3: #{tpu_custom_call.1} parent=1 // loop_header
      %s11 = sphi 0, %s15
      %p12 = scmp.ge.s32.totalorder %s11, 4
      %s21 = sphi 0, %s23
      %s24 = sphi 0, %s21
      %s25 = sphi 0, %s24
      %s41 = sphi 0, %s25
      %s45 = sphi 0, %s45
      %s47 = sphi 0, %s45
      %s48 = sphi 0, %s47
      %s62 = sphi 0, %s48
      %s66 = sphi 0, %s66
      %s68 = sphi 0, %s66
      %s69 = sphi 0, %s68
      %s83 = sphi 0, %s69
      %s87 = sphi 0, %s87
      %s89 = sphi 0, %s87
      %s90 = sphi 0, %s89
      %s104 = sphi 0, %s90
      %s108 = sphi 0, %s108
      %s110 = sphi 0, %s108
      %s111 = sphi 0, %s110
      %s125 = sphi 0, %s111
      %s131 = sphi 0, %s133
      %s134 = sphi 0, %s131
      %s135 = sphi 0, %s134
      %s151 = sphi 0, %s135
    $region4: #{tpu_custom_call.1} parent=1 // loop_header_branch
      %14 = sbr.rel (%p12) target = $region8
    $region5: #{tpu_custom_call.1} parent=1 // loop_body
      %s16 = ssub.s32 %s11, 1
      %s17 = ssub.s32 %s11, 2
      %s18 = sadd.s32 %s11, 1
      %s19 = ssub.s32 %s11, %s18
      %p20 = scmp.eq.s32.totalorder %s19, 0
      %s22 = sadd.s32 %s21, 1
      %s23 = scalar_select %p20, %s21, %s22
      %p26 = pneg %p20
      %p27 = scmp.eq.s32.totalorder %s11, 1
      %p28 = por %p26, %p27
      %p29 = scmp.ne.s32.totalorder %s21, %s24
      %p30 = scmp.eq.s32.totalorder %s11, 0
      %p31 = por %p29, %p30
      %p32 = scmp.ne.s32.totalorder %s21, %s24
      %p33 = scmp.eq.s32.totalorder %s16, 1
      %p34 = por %p32, %p33
      %p35 = scmp.ne.s32.totalorder %s24, %s25
      %p36 = scmp.eq.s32.totalorder %s16, 0
      %p37 = por %p35, %p36
      %p38 = scmp.ne.s32.totalorder %s24, %s25
      %p39 = scmp.eq.s32.totalorder %s17, 1
      %p40 = por %p38, %p39
      %p42 = scmp.ne.s32.totalorder %s25, %s41
      %p43 = scmp.eq.s32.totalorder %s17, 0
      %p44 = por %p42, %p43
      %s46 = sadd.s32 %s45, 1
      %p49 = scmp.eq.s32.totalorder %s11, 1
      %p50 = scmp.ne.s32.totalorder %s45, %s47
      %p51 = scmp.eq.s32.totalorder %s11, 0
      %p52 = por %p50, %p51
      %p53 = scmp.ne.s32.totalorder %s45, %s47
      %p54 = scmp.eq.s32.totalorder %s16, 1
      %p55 = por %p53, %p54
      %p56 = scmp.ne.s32.totalorder %s47, %s48
      %p57 = scmp.eq.s32.totalorder %s16, 0
      %p58 = por %p56, %p57
      %p59 = scmp.ne.s32.totalorder %s47, %s48
      %p60 = scmp.eq.s32.totalorder %s17, 1
      %p61 = por %p59, %p60
      %p63 = scmp.ne.s32.totalorder %s48, %s62
      %p64 = scmp.eq.s32.totalorder %s17, 0
      %p65 = por %p63, %p64
      %s67 = sadd.s32 %s66, 1
      %p70 = scmp.eq.s32.totalorder %s11, 1
      %p71 = scmp.ne.s32.totalorder %s66, %s68
      %p72 = scmp.eq.s32.totalorder %s11, 0
      %p73 = por %p71, %p72
      %p74 = scmp.ne.s32.totalorder %s66, %s68
      %p75 = scmp.eq.s32.totalorder %s16, 1
      %p76 = por %p74, %p75
      %p77 = scmp.ne.s32.totalorder %s68, %s69
      %p78 = scmp.eq.s32.totalorder %s16, 0
      %p79 = por %p77, %p78
      %p80 = scmp.ne.s32.totalorder %s68, %s69
      %p81 = scmp.eq.s32.totalorder %s17, 1
      %p82 = por %p80, %p81
      %p84 = scmp.ne.s32.totalorder %s69, %s83
      %p85 = scmp.eq.s32.totalorder %s17, 0
      %p86 = por %p84, %p85
      %s88 = sadd.s32 %s87, 1
      %p91 = scmp.eq.s32.totalorder %s11, 1
      %p92 = scmp.ne.s32.totalorder %s87, %s89
      %p93 = scmp.eq.s32.totalorder %s11, 0
      %p94 = por %p92, %p93
      %p95 = scmp.ne.s32.totalorder %s87, %s89
      %p96 = scmp.eq.s32.totalorder %s16, 1
      %p97 = por %p95, %p96
      %p98 = scmp.ne.s32.totalorder %s89, %s90
      %p99 = scmp.eq.s32.totalorder %s16, 0
      %p100 = por %p98, %p99
      %p101 = scmp.ne.s32.totalorder %s89, %s90
      %p102 = scmp.eq.s32.totalorder %s17, 1
      %p103 = por %p101, %p102
      %p105 = scmp.ne.s32.totalorder %s90, %s104
      %p106 = scmp.eq.s32.totalorder %s17, 0
      %p107 = por %p105, %p106
      %s109 = sadd.s32 %s108, 1
      %p112 = scmp.eq.s32.totalorder %s11, 1
      %p113 = scmp.ne.s32.totalorder %s108, %s110
      %p114 = scmp.eq.s32.totalorder %s11, 0
      %p115 = por %p113, %p114
      %p116 = scmp.ne.s32.totalorder %s108, %s110
      %p117 = scmp.eq.s32.totalorder %s16, 1
      %p118 = por %p116, %p117
      %p119 = scmp.ne.s32.totalorder %s110, %s111
      %p120 = scmp.eq.s32.totalorder %s16, 0
      %p121 = por %p119, %p120
      %p122 = scmp.ne.s32.totalorder %s110, %s111
      %p123 = scmp.eq.s32.totalorder %s17, 1
      %p124 = por %p122, %p123
      %p126 = scmp.ne.s32.totalorder %s111, %s125
      %p127 = scmp.eq.s32.totalorder %s17, 0
      %p128 = por %p126, %p127
      %s129 = ssub.s32 %s11, %s18
      %p130 = scmp.eq.s32.totalorder %s129, 0
      %s132 = sadd.s32 %s131, 1
      %s133 = scalar_select %p130, %s131, %s132
      %p136 = pneg %p130
      %p137 = scmp.eq.s32.totalorder %s11, 1
      %p138 = por %p136, %p137
      %p139 = scmp.ne.s32.totalorder %s131, %s134
      %p140 = scmp.eq.s32.totalorder %s11, 0
      %p141 = por %p139, %p140
      %p142 = scmp.ne.s32.totalorder %s131, %s134
      %p143 = scmp.eq.s32.totalorder %s16, 1
      %p144 = por %p142, %p143
      %p145 = scmp.ne.s32.totalorder %s134, %s135
      %p146 = scmp.eq.s32.totalorder %s16, 0
      %p147 = por %p145, %p146
      %p148 = scmp.ne.s32.totalorder %s134, %s135
      %p149 = scmp.eq.s32.totalorder %s17, 1
      %p150 = por %p148, %p149
      %p152 = scmp.ne.s32.totalorder %s135, %s151
      %p153 = scmp.eq.s32.totalorder %s17, 0
      %p154 = por %p152, %p153
      %p155 = scmp.le.s32.totalorder 1, %s11
      %p156 = scmp.lt.s32.totalorder %s11, 3
      %p157 = pnand %p155, %p156
      %p158 = pneg %p157
      // Predicated region
      $region9: #{tpu_custom_call.1} parent=5 // pred_check
        _
      $region10: #{tpu_custom_call.1} parent=5 // pred_check_branch
        %160 = sbr.rel (%p157) target = $region12
      $region11: #{tpu_custom_call.1} parent=5 // pred_region
        %s161 = ssub.s32 %s11, 1
        // Predicated region
        $region13: #{tpu_custom_call.1} parent=11 // pred_check
          %p162 = pneg %p58
        $region14: #{tpu_custom_call.1} parent=11 // pred_check_branch
          %164 = sbr.rel (%p162) target = $region16
        $region15: #{tpu_custom_call.1} parent=11 // pred_region
          _
        $region16: #{tpu_custom_call.1} parent=11 // pred_fallthru
          _
        // Predicated region
        $region17: #{tpu_custom_call.1} parent=11 // pred_check
          %p165 = pneg %p79
        $region18: #{tpu_custom_call.1} parent=11 // pred_check_branch
          %167 = sbr.rel (%p165) target = $region20
        $region19: #{tpu_custom_call.1} parent=11 // pred_region
          _
        $region20: #{tpu_custom_call.1} parent=11 // pred_fallthru
          _
        // Predicated region
        $region21: #{tpu_custom_call.1} parent=11 // pred_check
          %p168 = pneg %p100
        $region22: #{tpu_custom_call.1} parent=11 // pred_check_branch
          %170 = sbr.rel (%p168) target = $region24
        $region23: #{tpu_custom_call.1} parent=11 // pred_region
          _
        $region24: #{tpu_custom_call.1} parent=11 // pred_fallthru
          _
        // Predicated region
        $region25: #{tpu_custom_call.1} parent=11 // pred_check
          %p171 = pneg %p121
        $region26: #{tpu_custom_call.1} parent=11 // pred_check_branch
          %173 = sbr.rel (%p171) target = $region28
        $region27: #{tpu_custom_call.1} parent=11 // pred_region
          _
        $region28: #{tpu_custom_call.1} parent=11 // pred_fallthru
          _
      $region12: #{tpu_custom_call.1} parent=5 // pred_fallthru
        _
      %p174 = scmp.lt.s32.totalorder %s11, 2
      // Predicated region
      $region29: #{tpu_custom_call.1} parent=5 // pred_check
        %p175 = pneg %p174
      $region30: #{tpu_custom_call.1} parent=5 // pred_check_branch
        %177 = sbr.rel (%p175) target = $region32
      $region31: #{tpu_custom_call.1} parent=5 // pred_region
        // Predicated region
        $region33: #{tpu_custom_call.1} parent=31 // pred_check
          %p178 = pneg %p31
        $region34: #{tpu_custom_call.1} parent=31 // pred_check_branch
          %180 = sbr.rel (%p178) target = $region36
        $region35: #{tpu_custom_call.1} parent=31 // pred_region
          %s181 = smul.u32 13, %s11
          %s182 = ssub.s32 25, %s181
          %p183 = scmp.lt.s32.totalorder %s182, 13
          %s184 = scalar_select %p183, %s182, 13
          %s185 = smul.u32 128, %s184
          %p186 = scmp.lt.s32.totalorder %s181, 24
          %s187 = scalar_select %p186, %s181, 24
          %s188 = smul.addr %s187, 8
          %s189 = scalar_lea.vmem %s0, %s188
          %s190 = smul.u32 13, %s11
          %s191 = ssub.s32 25, %s190
          %p192 = scmp.lt.s32.totalorder %s191, 13
          %s193 = scalar_select %p192, %s191, 13
          %s194 = smul.u32 128, %s193
        $region36: #{tpu_custom_call.1} parent=31 // pred_fallthru
          _
      $region32: #{tpu_custom_call.1} parent=5 // pred_fallthru
        _
      %p195 = scmp.le.s32.totalorder 1, %s11
      %p196 = scmp.lt.s32.totalorder %s11, 3
      %p197 = pnand %p195, %p196
      %p198 = pneg %p197
      // Predicated region
      $region37: #{tpu_custom_call.1} parent=5 // pred_check
        _
      $region38: #{tpu_custom_call.1} parent=5 // pred_check_branch
        %200 = sbr.rel (%p197) target = $region40
      $region39: #{tpu_custom_call.1} parent=5 // pred_region
        %s201 = ssub.s32 %s11, 1
        %s202 = smul.u32 13, %s16
        %s203 = ssub.s32 25, %s202
        %p204 = scmp.lt.s32.totalorder %s203, 13
        %s205 = scalar_select %p204, %s203, 13
        %s206 = smul.u32 128, %s205
        %p207 = scmp.lt.s32.totalorder %s202, 24
        %s208 = scalar_select %p207, %s202, 24
        %s209 = smul.addr %s208, 8
        %s210 = scalar_lea.vmem %s0, %s209
        %p211 = pneg %p37
        %p212 = pneg %p34
        %p213 = pneg %p58
        %p214 = pneg %p55
        %p215 = pneg %p79
        %p216 = pneg %p76
        %p217 = pneg %p100
        %p218 = pneg %p97
        %p219 = pneg %p121
        %p220 = pneg %p118
        %p221 = pneg %p147
        %p222 = pneg %p144
        %s223 = sand.u32 %s134, 1
        %s224 = sand.u32 %s134, 1
        %s225 = smul.addr %s224, 104
        %s226 = scalar_lea.vmem [#allocation2], %s225
        %s227 = smul.u32 13, %s16
        %s228 = ssub.s32 25, %s227
        %p229 = scmp.lt.s32.totalorder %s228, 13
        %s230 = scalar_select %p229, %s228, 13
        %s231 = smul.u32 128, %s230
        %p232 = scmp.lt.s32.totalorder %s227, 24
        %s233 = scalar_select %p232, %s227, 24
        %s234 = smul.addr %s233, 8
        %s235 = scalar_lea.vmem %s0, %s234
        %s236 = smul.u32 13, %s16
        %s237 = ssub.s32 25, %s236
        %p238 = scmp.lt.s32.totalorder %s237, 13
        %s239 = scalar_select %p238, %s237, 13
        %s240 = smul.u32 128, %s239
        %s241 = smul.u32 13, %s16
        %s242 = ssub.s32 25, %s241
        %p243 = scmp.lt.s32.totalorder %s242, 13
        %s244 = scalar_select %p243, %s242, 13
        %s245 = smul.u32 128, %s244
        %v246 = vld [vmem:[%s235] sm:$0xff]
        %v247 = vld [vmem:[%s235 + $0x8] sm:$0xff]
        %v248 = vld [vmem:[%s235 + $0x10] sm:$0xff]
        %v249 = vld [vmem:[%s235 + $0x18] sm:$0xff]
        %v250 = vld [vmem:[%s235 + $0x20] sm:$0xff]
        %v251 = vld [vmem:[%s235 + $0x28] sm:$0xff]
        %v252 = vld [vmem:[%s235 + $0x30] sm:$0xff]
        %v253 = vld [vmem:[%s235 + $0x38] sm:$0xff]
        %v254 = vld [vmem:[%s235 + $0x40] sm:$0xff]
        %v255 = vld [vmem:[%s235 + $0x48] sm:$0xff]
        %v256 = vld [vmem:[%s235 + $0x50] sm:$0xff]
        %v257 = vld [vmem:[%s235 + $0x58] sm:$0xff]
        %v258 = vld [vmem:[%s235 + $0x60] sm:$0xff]
        %v259 = vld [vmem:[%s1] sm:$0x7]
        %v260 = vld [vmem:[%s3] sm:$0xff]
        %v261 = vld [vmem:[%s3 + $0x8] sm:$0x1]
        %v262 = vld [vmem:[%s2] sm:$0x1]
        %264 = vset.pattern.permute.xlu0 0
        %265 = vperm.xlu0 %264, %v246
        %v266 = vpop.permute.xlu0 %265
        %269 = vset.pattern.permute.xlu0 0
        %270 = vperm.xlu0 %269, %v247
        %v271 = vpop.permute.xlu0 %270
        %274 = vset.pattern.permute.xlu0 0
        %275 = vperm.xlu0 %274, %v248
        %v276 = vpop.permute.xlu0 %275
        %279 = vset.pattern.permute.xlu0 0
        %280 = vperm.xlu0 %279, %v249
        %v281 = vpop.permute.xlu0 %280
        %284 = vset.pattern.permute.xlu0 0
        %285 = vperm.xlu0 %284, %v250
        %v286 = vpop.permute.xlu0 %285
        %289 = vset.pattern.permute.xlu0 0
        %290 = vperm.xlu0 %289, %v251
        %v291 = vpop.permute.xlu0 %290
        %294 = vset.pattern.permute.xlu0 0
        %295 = vperm.xlu0 %294, %v252
        %v296 = vpop.permute.xlu0 %295
        %299 = vset.pattern.permute.xlu0 0
        %300 = vperm.xlu0 %299, %v253
        %v301 = vpop.permute.xlu0 %300
        %304 = vset.pattern.permute.xlu0 0
        %305 = vperm.xlu0 %304, %v254
        %v306 = vpop.permute.xlu0 %305
        %309 = vset.pattern.permute.xlu0 0
        %310 = vperm.xlu0 %309, %v255
        %v311 = vpop.permute.xlu0 %310
        %314 = vset.pattern.permute.xlu0 0
        %315 = vperm.xlu0 %314, %v256
        %v316 = vpop.permute.xlu0 %315
        %319 = vset.pattern.permute.xlu0 0
        %320 = vperm.xlu0 %319, %v257
        %v321 = vpop.permute.xlu0 %320
        %324 = vset.pattern.permute.xlu0 0
        %325 = vperm.xlu0 %324, %v258
        %v326 = vpop.permute.xlu0 %325
        %v328 = vlaneseq
        %v329 = vshrl.u32 %v328, 7
        %v330 = vsub.s32 0, %v329
        %v331 = vrot.slane %v259, %v330
        %v332 = vmul.f32 %v266, %v331
        %v333 = vmul.f32 %v271, %v331
        %v334 = vmul.f32 %v276, %v331
        %v335 = vmul.f32 %v281, %v331
        %v336 = vmul.f32 %v286, %v331
        %v337 = vmul.f32 %v291, %v331
        %v338 = vmul.f32 %v296, %v331
        %v339 = vmul.f32 %v301, %v331
        %v340 = vmul.f32 %v306, %v331
        %v341 = vmul.f32 %v311, %v331
        %v342 = vmul.f32 %v316, %v331
        %v343 = vmul.f32 %v321, %v331
        %v344 = vmul.f32 %v326, %v331
        %v346 = vlaneseq
        %v347 = vshrl.u32 %v346, 7
        %v348 = vsub.s32 0, %v347
        %v349 = vrot.slane %v262, %v348
        %v351 = vadd.f32 %v349, %v332
        %v352 = vadd.f32 %v349, %v333
        %v353 = vadd.f32 %v349, %v334
        %v354 = vadd.f32 %v349, %v335
        %v355 = vadd.f32 %v349, %v336
        %v356 = vadd.f32 %v349, %v337
        %v357 = vadd.f32 %v349, %v338
        %v358 = vadd.f32 %v349, %v339
        %v359 = vadd.f32 %v349, %v340
        %v360 = vadd.f32 %v349, %v341
        %v361 = vadd.f32 %v349, %v342
        %v362 = vadd.f32 %v349, %v343
        %v363 = vadd.f32 %v349, %v344
        %364 = vset.pattern.permute.xlu0 1
        %365 = vperm.xlu0 %364, %v246
        %v366 = vpop.permute.xlu0 %365
        %368 = vset.pattern.permute.xlu0 1
        %369 = vperm.xlu0 %368, %v247
        %v370 = vpop.permute.xlu0 %369
        %372 = vset.pattern.permute.xlu0 1
        %373 = vperm.xlu0 %372, %v248
        %v374 = vpop.permute.xlu0 %373
        %376 = vset.pattern.permute.xlu0 1
        %377 = vperm.xlu0 %376, %v249
        %v378 = vpop.permute.xlu0 %377
        %380 = vset.pattern.permute.xlu0 1
        %381 = vperm.xlu0 %380, %v250
        %v382 = vpop.permute.xlu0 %381
        %384 = vset.pattern.permute.xlu0 1
        %385 = vperm.xlu0 %384, %v251
        %v386 = vpop.permute.xlu0 %385
        %388 = vset.pattern.permute.xlu0 1
        %389 = vperm.xlu0 %388, %v252
        %v390 = vpop.permute.xlu0 %389
        %392 = vset.pattern.permute.xlu0 1
        %393 = vperm.xlu0 %392, %v253
        %v394 = vpop.permute.xlu0 %393
        %396 = vset.pattern.permute.xlu0 1
        %397 = vperm.xlu0 %396, %v254
        %v398 = vpop.permute.xlu0 %397
        %400 = vset.pattern.permute.xlu0 1
        %401 = vperm.xlu0 %400, %v255
        %v402 = vpop.permute.xlu0 %401
        %404 = vset.pattern.permute.xlu0 1
        %405 = vperm.xlu0 %404, %v256
        %v406 = vpop.permute.xlu0 %405
        %408 = vset.pattern.permute.xlu0 1
        %409 = vperm.xlu0 %408, %v257
        %v410 = vpop.permute.xlu0 %409
        %412 = vset.pattern.permute.xlu0 1
        %413 = vperm.xlu0 %412, %v258
        %v414 = vpop.permute.xlu0 %413
        %v416 = vlaneseq
        %v417 = vshrl.u32 %v416, 7
        %v418 = vsub.s32 1, %v417
        %v419 = vrot.slane %v259, %v418
        %v420 = vmul.f32 %v366, %v419
        %v421 = vmul.f32 %v370, %v419
        %v422 = vmul.f32 %v374, %v419
        %v423 = vmul.f32 %v378, %v419
        %v424 = vmul.f32 %v382, %v419
        %v425 = vmul.f32 %v386, %v419
        %v426 = vmul.f32 %v390, %v419
        %v427 = vmul.f32 %v394, %v419
        %v428 = vmul.f32 %v398, %v419
        %v429 = vmul.f32 %v402, %v419
        %v430 = vmul.f32 %v406, %v419
        %v431 = vmul.f32 %v410, %v419
        %v432 = vmul.f32 %v414, %v419
        %v433 = vadd.f32 %v351, %v420
        %v434 = vadd.f32 %v352, %v421
        %v435 = vadd.f32 %v353, %v422
        %v436 = vadd.f32 %v354, %v423
        %v437 = vadd.f32 %v355, %v424
        %v438 = vadd.f32 %v356, %v425
        %v439 = vadd.f32 %v357, %v426
        %v440 = vadd.f32 %v358, %v427
        %v441 = vadd.f32 %v359, %v428
        %v442 = vadd.f32 %v360, %v429
        %v443 = vadd.f32 %v361, %v430
        %v444 = vadd.f32 %v362, %v431
        %v445 = vadd.f32 %v363, %v432
        %446 = vset.pattern.permute.xlu0 2
        %447 = vperm.xlu0 %446, %v246
        %v448 = vpop.permute.xlu0 %447
        %450 = vset.pattern.permute.xlu0 2
        %451 = vperm.xlu0 %450, %v247
        %v452 = vpop.permute.xlu0 %451
        %454 = vset.pattern.permute.xlu0 2
        %455 = vperm.xlu0 %454, %v248
        %v456 = vpop.permute.xlu0 %455
        %458 = vset.pattern.permute.xlu0 2
        %459 = vperm.xlu0 %458, %v249
        %v460 = vpop.permute.xlu0 %459
        %462 = vset.pattern.permute.xlu0 2
        %463 = vperm.xlu0 %462, %v250
        %v464 = vpop.permute.xlu0 %463
        %466 = vset.pattern.permute.xlu0 2
        %467 = vperm.xlu0 %466, %v251
        %v468 = vpop.permute.xlu0 %467
        %470 = vset.pattern.permute.xlu0 2
        %471 = vperm.xlu0 %470, %v252
        %v472 = vpop.permute.xlu0 %471
        %474 = vset.pattern.permute.xlu0 2
        %475 = vperm.xlu0 %474, %v253
        %v476 = vpop.permute.xlu0 %475
        %478 = vset.pattern.permute.xlu0 2
        %479 = vperm.xlu0 %478, %v254
        %v480 = vpop.permute.xlu0 %479
        %482 = vset.pattern.permute.xlu0 2
        %483 = vperm.xlu0 %482, %v255
        %v484 = vpop.permute.xlu0 %483
        %486 = vset.pattern.permute.xlu0 2
        %487 = vperm.xlu0 %486, %v256
        %v488 = vpop.permute.xlu0 %487
        %490 = vset.pattern.permute.xlu0 2
        %491 = vperm.xlu0 %490, %v257
        %v492 = vpop.permute.xlu0 %491
        %494 = vset.pattern.permute.xlu0 2
        %495 = vperm.xlu0 %494, %v258
        %v496 = vpop.permute.xlu0 %495
        %v498 = vlaneseq
        %v499 = vshrl.u32 %v498, 7
        %v500 = vsub.s32 2, %v499
        %v501 = vrot.slane %v259, %v500
        %v502 = vmul.f32 %v448, %v501
        %v503 = vmul.f32 %v452, %v501
        %v504 = vmul.f32 %v456, %v501
        %v505 = vmul.f32 %v460, %v501
        %v506 = vmul.f32 %v464, %v501
        %v507 = vmul.f32 %v468, %v501
        %v508 = vmul.f32 %v472, %v501
        %v509 = vmul.f32 %v476, %v501
        %v510 = vmul.f32 %v480, %v501
        %v511 = vmul.f32 %v484, %v501
        %v512 = vmul.f32 %v488, %v501
        %v513 = vmul.f32 %v492, %v501
        %v514 = vmul.f32 %v496, %v501
        %v515 = vadd.f32 %v433, %v502
        %v516 = vadd.f32 %v434, %v503
        %v517 = vadd.f32 %v435, %v504
        %v518 = vadd.f32 %v436, %v505
        %v519 = vadd.f32 %v437, %v506
        %v520 = vadd.f32 %v438, %v507
        %v521 = vadd.f32 %v439, %v508
        %v522 = vadd.f32 %v440, %v509
        %v523 = vadd.f32 %v441, %v510
        %v524 = vadd.f32 %v442, %v511
        %v525 = vadd.f32 %v443, %v512
        %v526 = vadd.f32 %v444, %v513
        %v527 = vadd.f32 %v445, %v514
        %v528 = vmax.f32 %v515, 0.0
        %v529 = vmax.f32 %v516, 0.0
        %v530 = vmax.f32 %v517, 0.0
        %v531 = vmax.f32 %v518, 0.0
        %v532 = vmax.f32 %v519, 0.0
        %v533 = vmax.f32 %v520, 0.0
        %v534 = vmax.f32 %v521, 0.0
        %v535 = vmax.f32 %v522, 0.0
        %v536 = vmax.f32 %v523, 0.0
        %v537 = vmax.f32 %v524, 0.0
        %v538 = vmax.f32 %v525, 0.0
        %v539 = vmax.f32 %v526, 0.0
        %v540 = vmax.f32 %v527, 0.0
        %v541 = vld [vmem:[%s4] sm:$0x1]
        %543 = vset.pattern.permute.xlu0 0
        %544 = vperm.xlu0 %543, %v528
        %v545 = vpop.permute.xlu0 %544
        %548 = vset.pattern.permute.xlu0 0
        %549 = vperm.xlu0 %548, %v529
        %v550 = vpop.permute.xlu0 %549
        %553 = vset.pattern.permute.xlu0 0
        %554 = vperm.xlu0 %553, %v530
        %v555 = vpop.permute.xlu0 %554
        %558 = vset.pattern.permute.xlu0 0
        %559 = vperm.xlu0 %558, %v531
        %v560 = vpop.permute.xlu0 %559
        %563 = vset.pattern.permute.xlu0 0
        %564 = vperm.xlu0 %563, %v532
        %v565 = vpop.permute.xlu0 %564
        %568 = vset.pattern.permute.xlu0 0
        %569 = vperm.xlu0 %568, %v533
        %v570 = vpop.permute.xlu0 %569
        %573 = vset.pattern.permute.xlu0 0
        %574 = vperm.xlu0 %573, %v534
        %v575 = vpop.permute.xlu0 %574
        %578 = vset.pattern.permute.xlu0 0
        %579 = vperm.xlu0 %578, %v535
        %v580 = vpop.permute.xlu0 %579
        %583 = vset.pattern.permute.xlu0 0
        %584 = vperm.xlu0 %583, %v536
        %v585 = vpop.permute.xlu0 %584
        %588 = vset.pattern.permute.xlu0 0
        %589 = vperm.xlu0 %588, %v537
        %v590 = vpop.permute.xlu0 %589
        %593 = vset.pattern.permute.xlu0 0
        %594 = vperm.xlu0 %593, %v538
        %v595 = vpop.permute.xlu0 %594
        %598 = vset.pattern.permute.xlu0 0
        %599 = vperm.xlu0 %598, %v539
        %v600 = vpop.permute.xlu0 %599
        %603 = vset.pattern.permute.xlu0 0
        %604 = vperm.xlu0 %603, %v540
        %v605 = vpop.permute.xlu0 %604
        %v607 = vlaneseq
        %v608 = vshrl.u32 %v607, 7
        %v609 = vsub.s32 0, %v608
        %v610 = vrot.slane %v260, %v609
        %v611 = vmul.f32 %v545, %v610
        %v612 = vmul.f32 %v550, %v610
        %v613 = vmul.f32 %v555, %v610
        %v614 = vmul.f32 %v560, %v610
        %v615 = vmul.f32 %v565, %v610
        %v616 = vmul.f32 %v570, %v610
        %v617 = vmul.f32 %v575, %v610
        %v618 = vmul.f32 %v580, %v610
        %v619 = vmul.f32 %v585, %v610
        %v620 = vmul.f32 %v590, %v610
        %v621 = vmul.f32 %v595, %v610
        %v622 = vmul.f32 %v600, %v610
        %v623 = vmul.f32 %v605, %v610
        %v625 = vlaneseq
        %v626 = vshrl.u32 %v625, 7
        %v627 = vsub.s32 0, %v626
        %v628 = vrot.slane %v541, %v627
        %v630 = vadd.f32 %v628, %v611
        %v631 = vadd.f32 %v628, %v612
        %v632 = vadd.f32 %v628, %v613
        %v633 = vadd.f32 %v628, %v614
        %v634 = vadd.f32 %v628, %v615
        %v635 = vadd.f32 %v628, %v616
        %v636 = vadd.f32 %v628, %v617
        %v637 = vadd.f32 %v628, %v618
        %v638 = vadd.f32 %v628, %v619
        %v639 = vadd.f32 %v628, %v620
        %v640 = vadd.f32 %v628, %v621
        %v641 = vadd.f32 %v628, %v622
        %v642 = vadd.f32 %v628, %v623
        %643 = vset.pattern.permute.xlu0 1
        %644 = vperm.xlu0 %643, %v528
        %v645 = vpop.permute.xlu0 %644
        %647 = vset.pattern.permute.xlu0 1
        %648 = vperm.xlu0 %647, %v529
        %v649 = vpop.permute.xlu0 %648
        %651 = vset.pattern.permute.xlu0 1
        %652 = vperm.xlu0 %651, %v530
        %v653 = vpop.permute.xlu0 %652
        %655 = vset.pattern.permute.xlu0 1
        %656 = vperm.xlu0 %655, %v531
        %v657 = vpop.permute.xlu0 %656
        %659 = vset.pattern.permute.xlu0 1
        %660 = vperm.xlu0 %659, %v532
        %v661 = vpop.permute.xlu0 %660
        %663 = vset.pattern.permute.xlu0 1
        %664 = vperm.xlu0 %663, %v533
        %v665 = vpop.permute.xlu0 %664
        %667 = vset.pattern.permute.xlu0 1
        %668 = vperm.xlu0 %667, %v534
        %v669 = vpop.permute.xlu0 %668
        %671 = vset.pattern.permute.xlu0 1
        %672 = vperm.xlu0 %671, %v535
        %v673 = vpop.permute.xlu0 %672
        %675 = vset.pattern.permute.xlu0 1
        %676 = vperm.xlu0 %675, %v536
        %v677 = vpop.permute.xlu0 %676
        %679 = vset.pattern.permute.xlu0 1
        %680 = vperm.xlu0 %679, %v537
        %v681 = vpop.permute.xlu0 %680
        %683 = vset.pattern.permute.xlu0 1
        %684 = vperm.xlu0 %683, %v538
        %v685 = vpop.permute.xlu0 %684
        %687 = vset.pattern.permute.xlu0 1
        %688 = vperm.xlu0 %687, %v539
        %v689 = vpop.permute.xlu0 %688
        %691 = vset.pattern.permute.xlu0 1
        %692 = vperm.xlu0 %691, %v540
        %v693 = vpop.permute.xlu0 %692
        %v695 = vlaneseq
        %v696 = vshrl.u32 %v695, 7
        %v697 = vsub.s32 1, %v696
        %v698 = vrot.slane %v260, %v697
        %v699 = vmul.f32 %v645, %v698
        %v700 = vmul.f32 %v649, %v698
        %v701 = vmul.f32 %v653, %v698
        %v702 = vmul.f32 %v657, %v698
        %v703 = vmul.f32 %v661, %v698
        %v704 = vmul.f32 %v665, %v698
        %v705 = vmul.f32 %v669, %v698
        %v706 = vmul.f32 %v673, %v698
        %v707 = vmul.f32 %v677, %v698
        %v708 = vmul.f32 %v681, %v698
        %v709 = vmul.f32 %v685, %v698
        %v710 = vmul.f32 %v689, %v698
        %v711 = vmul.f32 %v693, %v698
        %v712 = vadd.f32 %v630, %v699
        %v713 = vadd.f32 %v631, %v700
        %v714 = vadd.f32 %v632, %v701
        %v715 = vadd.f32 %v633, %v702
        %v716 = vadd.f32 %v634, %v703
        %v717 = vadd.f32 %v635, %v704
        %v718 = vadd.f32 %v636, %v705
        %v719 = vadd.f32 %v637, %v706
        %v720 = vadd.f32 %v638, %v707
        %v721 = vadd.f32 %v639, %v708
        %v722 = vadd.f32 %v640, %v709
        %v723 = vadd.f32 %v641, %v710
        %v724 = vadd.f32 %v642, %v711
        %725 = vset.pattern.permute.xlu0 2
        %726 = vperm.xlu0 %725, %v528
        %v727 = vpop.permute.xlu0 %726
        %729 = vset.pattern.permute.xlu0 2
        %730 = vperm.xlu0 %729, %v529
        %v731 = vpop.permute.xlu0 %730
        %733 = vset.pattern.permute.xlu0 2
        %734 = vperm.xlu0 %733, %v530
        %v735 = vpop.permute.xlu0 %734
        %737 = vset.pattern.permute.xlu0 2
        %738 = vperm.xlu0 %737, %v531
        %v739 = vpop.permute.xlu0 %738
        %741 = vset.pattern.permute.xlu0 2
        %742 = vperm.xlu0 %741, %v532
        %v743 = vpop.permute.xlu0 %742
        %745 = vset.pattern.permute.xlu0 2
        %746 = vperm.xlu0 %745, %v533
        %v747 = vpop.permute.xlu0 %746
        %749 = vset.pattern.permute.xlu0 2
        %750 = vperm.xlu0 %749, %v534
        %v751 = vpop.permute.xlu0 %750
        %753 = vset.pattern.permute.xlu0 2
        %754 = vperm.xlu0 %753, %v535
        %v755 = vpop.permute.xlu0 %754
        %757 = vset.pattern.permute.xlu0 2
        %758 = vperm.xlu0 %757, %v536
        %v759 = vpop.permute.xlu0 %758
        %761 = vset.pattern.permute.xlu0 2
        %762 = vperm.xlu0 %761, %v537
        %v763 = vpop.permute.xlu0 %762
        %765 = vset.pattern.permute.xlu0 2
        %766 = vperm.xlu0 %765, %v538
        %v767 = vpop.permute.xlu0 %766
        %769 = vset.pattern.permute.xlu0 2
        %770 = vperm.xlu0 %769, %v539
        %v771 = vpop.permute.xlu0 %770
        %773 = vset.pattern.permute.xlu0 2
        %774 = vperm.xlu0 %773, %v540
        %v775 = vpop.permute.xlu0 %774
        %v777 = vlaneseq
        %v778 = vshrl.u32 %v777, 7
        %v779 = vsub.s32 2, %v778
        %v780 = vrot.slane %v260, %v779
        %v781 = vmul.f32 %v727, %v780
        %v782 = vmul.f32 %v731, %v780
        %v783 = vmul.f32 %v735, %v780
        %v784 = vmul.f32 %v739, %v780
        %v785 = vmul.f32 %v743, %v780
        %v786 = vmul.f32 %v747, %v780
        %v787 = vmul.f32 %v751, %v780
        %v788 = vmul.f32 %v755, %v780
        %v789 = vmul.f32 %v759, %v780
        %v790 = vmul.f32 %v763, %v780
        %v791 = vmul.f32 %v767, %v780
        %v792 = vmul.f32 %v771, %v780
        %v793 = vmul.f32 %v775, %v780
        %v794 = vadd.f32 %v712, %v781
        %v795 = vadd.f32 %v713, %v782
        %v796 = vadd.f32 %v714, %v783
        %v797 = vadd.f32 %v715, %v784
        %v798 = vadd.f32 %v716, %v785
        %v799 = vadd.f32 %v717, %v786
        %v800 = vadd.f32 %v718, %v787
        %v801 = vadd.f32 %v719, %v788
        %v802 = vadd.f32 %v720, %v789
        %v803 = vadd.f32 %v721, %v790
        %v804 = vadd.f32 %v722, %v791
        %v805 = vadd.f32 %v723, %v792
        %v806 = vadd.f32 %v724, %v793
        %807 = vset.pattern.permute.xlu0 3
        %808 = vperm.xlu0 %807, %v528
        %v809 = vpop.permute.xlu0 %808
        %811 = vset.pattern.permute.xlu0 3
        %812 = vperm.xlu0 %811, %v529
        %v813 = vpop.permute.xlu0 %812
        %815 = vset.pattern.permute.xlu0 3
        %816 = vperm.xlu0 %815, %v530
        %v817 = vpop.permute.xlu0 %816
        %819 = vset.pattern.permute.xlu0 3
        %820 = vperm.xlu0 %819, %v531
        %v821 = vpop.permute.xlu0 %820
        %823 = vset.pattern.permute.xlu0 3
        %824 = vperm.xlu0 %823, %v532
        %v825 = vpop.permute.xlu0 %824
        %827 = vset.pattern.permute.xlu0 3
        %828 = vperm.xlu0 %827, %v533
        %v829 = vpop.permute.xlu0 %828
        %831 = vset.pattern.permute.xlu0 3
        %832 = vperm.xlu0 %831, %v534
        %v833 = vpop.permute.xlu0 %832
        %835 = vset.pattern.permute.xlu0 3
        %836 = vperm.xlu0 %835, %v535
        %v837 = vpop.permute.xlu0 %836
        %839 = vset.pattern.permute.xlu0 3
        %840 = vperm.xlu0 %839, %v536
        %v841 = vpop.permute.xlu0 %840
        %843 = vset.pattern.permute.xlu0 3
        %844 = vperm.xlu0 %843, %v537
        %v845 = vpop.permute.xlu0 %844
        %847 = vset.pattern.permute.xlu0 3
        %848 = vperm.xlu0 %847, %v538
        %v849 = vpop.permute.xlu0 %848
        %851 = vset.pattern.permute.xlu0 3
        %852 = vperm.xlu0 %851, %v539
        %v853 = vpop.permute.xlu0 %852
        %855 = vset.pattern.permute.xlu0 3
        %856 = vperm.xlu0 %855, %v540
        %v857 = vpop.permute.xlu0 %856
        %v859 = vlaneseq
        %v860 = vshrl.u32 %v859, 7
        %v861 = vsub.s32 3, %v860
        %v862 = vrot.slane %v260, %v861
        %v863 = vmul.f32 %v809, %v862
        %v864 = vmul.f32 %v813, %v862
        %v865 = vmul.f32 %v817, %v862
        %v866 = vmul.f32 %v821, %v862
        %v867 = vmul.f32 %v825, %v862
        %v868 = vmul.f32 %v829, %v862
        %v869 = vmul.f32 %v833, %v862
        %v870 = vmul.f32 %v837, %v862
        %v871 = vmul.f32 %v841, %v862
        %v872 = vmul.f32 %v845, %v862
        %v873 = vmul.f32 %v849, %v862
        %v874 = vmul.f32 %v853, %v862
        %v875 = vmul.f32 %v857, %v862
        %v876 = vadd.f32 %v794, %v863
        %v877 = vadd.f32 %v795, %v864
        %v878 = vadd.f32 %v796, %v865
        %v879 = vadd.f32 %v797, %v866
        %v880 = vadd.f32 %v798, %v867
        %v881 = vadd.f32 %v799, %v868
        %v882 = vadd.f32 %v800, %v869
        %v883 = vadd.f32 %v801, %v870
        %v884 = vadd.f32 %v802, %v871
        %v885 = vadd.f32 %v803, %v872
        %v886 = vadd.f32 %v804, %v873
        %v887 = vadd.f32 %v805, %v874
        %v888 = vadd.f32 %v806, %v875
        %889 = vset.pattern.permute.xlu0 4
        %890 = vperm.xlu0 %889, %v528
        %v891 = vpop.permute.xlu0 %890
        %893 = vset.pattern.permute.xlu0 4
        %894 = vperm.xlu0 %893, %v529
        %v895 = vpop.permute.xlu0 %894
        %897 = vset.pattern.permute.xlu0 4
        %898 = vperm.xlu0 %897, %v530
        %v899 = vpop.permute.xlu0 %898
        %901 = vset.pattern.permute.xlu0 4
        %902 = vperm.xlu0 %901, %v531
        %v903 = vpop.permute.xlu0 %902
        %905 = vset.pattern.permute.xlu0 4
        %906 = vperm.xlu0 %905, %v532
        %v907 = vpop.permute.xlu0 %906
        %909 = vset.pattern.permute.xlu0 4
        %910 = vperm.xlu0 %909, %v533
        %v911 = vpop.permute.xlu0 %910
        %913 = vset.pattern.permute.xlu0 4
        %914 = vperm.xlu0 %913, %v534
        %v915 = vpop.permute.xlu0 %914
        %917 = vset.pattern.permute.xlu0 4
        %918 = vperm.xlu0 %917, %v535
        %v919 = vpop.permute.xlu0 %918
        %921 = vset.pattern.permute.xlu0 4
        %922 = vperm.xlu0 %921, %v536
        %v923 = vpop.permute.xlu0 %922
        %925 = vset.pattern.permute.xlu0 4
        %926 = vperm.xlu0 %925, %v537
        %v927 = vpop.permute.xlu0 %926
        %929 = vset.pattern.permute.xlu0 4
        %930 = vperm.xlu0 %929, %v538
        %v931 = vpop.permute.xlu0 %930
        %933 = vset.pattern.permute.xlu0 4
        %934 = vperm.xlu0 %933, %v539
        %v935 = vpop.permute.xlu0 %934
        %937 = vset.pattern.permute.xlu0 4
        %938 = vperm.xlu0 %937, %v540
        %v939 = vpop.permute.xlu0 %938
        %v941 = vlaneseq
        %v942 = vshrl.u32 %v941, 7
        %v943 = vsub.s32 4, %v942
        %v944 = vrot.slane %v260, %v943
        %v945 = vmul.f32 %v891, %v944
        %v946 = vmul.f32 %v895, %v944
        %v947 = vmul.f32 %v899, %v944
        %v948 = vmul.f32 %v903, %v944
        %v949 = vmul.f32 %v907, %v944
        %v950 = vmul.f32 %v911, %v944
        %v951 = vmul.f32 %v915, %v944
        %v952 = vmul.f32 %v919, %v944
        %v953 = vmul.f32 %v923, %v944
        %v954 = vmul.f32 %v927, %v944
        %v955 = vmul.f32 %v931, %v944
        %v956 = vmul.f32 %v935, %v944
        %v957 = vmul.f32 %v939, %v944
        %v958 = vadd.f32 %v876, %v945
        %v959 = vadd.f32 %v877, %v946
        %v960 = vadd.f32 %v878, %v947
        %v961 = vadd.f32 %v879, %v948
        %v962 = vadd.f32 %v880, %v949
        %v963 = vadd.f32 %v881, %v950
        %v964 = vadd.f32 %v882, %v951
        %v965 = vadd.f32 %v883, %v952
        %v966 = vadd.f32 %v884, %v953
        %v967 = vadd.f32 %v885, %v954
        %v968 = vadd.f32 %v886, %v955
        %v969 = vadd.f32 %v887, %v956
        %v970 = vadd.f32 %v888, %v957
        %971 = vset.pattern.permute.xlu0 5
        %972 = vperm.xlu0 %971, %v528
        %v973 = vpop.permute.xlu0 %972
        %975 = vset.pattern.permute.xlu0 5
        %976 = vperm.xlu0 %975, %v529
        %v977 = vpop.permute.xlu0 %976
        %979 = vset.pattern.permute.xlu0 5
        %980 = vperm.xlu0 %979, %v530
        %v981 = vpop.permute.xlu0 %980
        %983 = vset.pattern.permute.xlu0 5
        %984 = vperm.xlu0 %983, %v531
        %v985 = vpop.permute.xlu0 %984
        %987 = vset.pattern.permute.xlu0 5
        %988 = vperm.xlu0 %987, %v532
        %v989 = vpop.permute.xlu0 %988
        %991 = vset.pattern.permute.xlu0 5
        %992 = vperm.xlu0 %991, %v533
        %v993 = vpop.permute.xlu0 %992
        %995 = vset.pattern.permute.xlu0 5
        %996 = vperm.xlu0 %995, %v534
        %v997 = vpop.permute.xlu0 %996
        %999 = vset.pattern.permute.xlu0 5
        %1000 = vperm.xlu0 %999, %v535
        %v1001 = vpop.permute.xlu0 %1000
        %1003 = vset.pattern.permute.xlu0 5
        %1004 = vperm.xlu0 %1003, %v536
        %v1005 = vpop.permute.xlu0 %1004
        %1007 = vset.pattern.permute.xlu0 5
        %1008 = vperm.xlu0 %1007, %v537
        %v1009 = vpop.permute.xlu0 %1008
        %1011 = vset.pattern.permute.xlu0 5
        %1012 = vperm.xlu0 %1011, %v538
        %v1013 = vpop.permute.xlu0 %1012
        %1015 = vset.pattern.permute.xlu0 5
        %1016 = vperm.xlu0 %1015, %v539
        %v1017 = vpop.permute.xlu0 %1016
        %1019 = vset.pattern.permute.xlu0 5
        %1020 = vperm.xlu0 %1019, %v540
        %v1021 = vpop.permute.xlu0 %1020
        %v1023 = vlaneseq
        %v1024 = vshrl.u32 %v1023, 7
        %v1025 = vsub.s32 5, %v1024
        %v1026 = vrot.slane %v260, %v1025
        %v1027 = vmul.f32 %v973, %v1026
        %v1028 = vmul.f32 %v977, %v1026
        %v1029 = vmul.f32 %v981, %v1026
        %v1030 = vmul.f32 %v985, %v1026
        %v1031 = vmul.f32 %v989, %v1026
        %v1032 = vmul.f32 %v993, %v1026
        %v1033 = vmul.f32 %v997, %v1026
        %v1034 = vmul.f32 %v1001, %v1026
        %v1035 = vmul.f32 %v1005, %v1026
        %v1036 = vmul.f32 %v1009, %v1026
        %v1037 = vmul.f32 %v1013, %v1026
        %v1038 = vmul.f32 %v1017, %v1026
        %v1039 = vmul.f32 %v1021, %v1026
        %v1040 = vadd.f32 %v958, %v1027
        %v1041 = vadd.f32 %v959, %v1028
        %v1042 = vadd.f32 %v960, %v1029
        %v1043 = vadd.f32 %v961, %v1030
        %v1044 = vadd.f32 %v962, %v1031
        %v1045 = vadd.f32 %v963, %v1032
        %v1046 = vadd.f32 %v964, %v1033
        %v1047 = vadd.f32 %v965, %v1034
        %v1048 = vadd.f32 %v966, %v1035
        %v1049 = vadd.f32 %v967, %v1036
        %v1050 = vadd.f32 %v968, %v1037
        %v1051 = vadd.f32 %v969, %v1038
        %v1052 = vadd.f32 %v970, %v1039
        %1053 = vset.pattern.permute.xlu0 6
        %1054 = vperm.xlu0 %1053, %v528
        %v1055 = vpop.permute.xlu0 %1054
        %1057 = vset.pattern.permute.xlu0 6
        %1058 = vperm.xlu0 %1057, %v529
        %v1059 = vpop.permute.xlu0 %1058
        %1061 = vset.pattern.permute.xlu0 6
        %1062 = vperm.xlu0 %1061, %v530
        %v1063 = vpop.permute.xlu0 %1062
        %1065 = vset.pattern.permute.xlu0 6
        %1066 = vperm.xlu0 %1065, %v531
        %v1067 = vpop.permute.xlu0 %1066
        %1069 = vset.pattern.permute.xlu0 6
        %1070 = vperm.xlu0 %1069, %v532
        %v1071 = vpop.permute.xlu0 %1070
        %1073 = vset.pattern.permute.xlu0 6
        %1074 = vperm.xlu0 %1073, %v533
        %v1075 = vpop.permute.xlu0 %1074
        %1077 = vset.pattern.permute.xlu0 6
        %1078 = vperm.xlu0 %1077, %v534
        %v1079 = vpop.permute.xlu0 %1078
        %1081 = vset.pattern.permute.xlu0 6
        %1082 = vperm.xlu0 %1081, %v535
        %v1083 = vpop.permute.xlu0 %1082
        %1085 = vset.pattern.permute.xlu0 6
        %1086 = vperm.xlu0 %1085, %v536
        %v1087 = vpop.permute.xlu0 %1086
        %1089 = vset.pattern.permute.xlu0 6
        %1090 = vperm.xlu0 %1089, %v537
        %v1091 = vpop.permute.xlu0 %1090
        %1093 = vset.pattern.permute.xlu0 6
        %1094 = vperm.xlu0 %1093, %v538
        %v1095 = vpop.permute.xlu0 %1094
        %1097 = vset.pattern.permute.xlu0 6
        %1098 = vperm.xlu0 %1097, %v539
        %v1099 = vpop.permute.xlu0 %1098
        %1101 = vset.pattern.permute.xlu0 6
        %1102 = vperm.xlu0 %1101, %v540
        %v1103 = vpop.permute.xlu0 %1102
        %v1105 = vlaneseq
        %v1106 = vshrl.u32 %v1105, 7
        %v1107 = vsub.s32 6, %v1106
        %v1108 = vrot.slane %v260, %v1107
        %v1109 = vmul.f32 %v1055, %v1108
        %v1110 = vmul.f32 %v1059, %v1108
        %v1111 = vmul.f32 %v1063, %v1108
        %v1112 = vmul.f32 %v1067, %v1108
        %v1113 = vmul.f32 %v1071, %v1108
        %v1114 = vmul.f32 %v1075, %v1108
        %v1115 = vmul.f32 %v1079, %v1108
        %v1116 = vmul.f32 %v1083, %v1108
        %v1117 = vmul.f32 %v1087, %v1108
        %v1118 = vmul.f32 %v1091, %v1108
        %v1119 = vmul.f32 %v1095, %v1108
        %v1120 = vmul.f32 %v1099, %v1108
        %v1121 = vmul.f32 %v1103, %v1108
        %v1122 = vadd.f32 %v1040, %v1109
        %v1123 = vadd.f32 %v1041, %v1110
        %v1124 = vadd.f32 %v1042, %v1111
        %v1125 = vadd.f32 %v1043, %v1112
        %v1126 = vadd.f32 %v1044, %v1113
        %v1127 = vadd.f32 %v1045, %v1114
        %v1128 = vadd.f32 %v1046, %v1115
        %v1129 = vadd.f32 %v1047, %v1116
        %v1130 = vadd.f32 %v1048, %v1117
        %v1131 = vadd.f32 %v1049, %v1118
        %v1132 = vadd.f32 %v1050, %v1119
        %v1133 = vadd.f32 %v1051, %v1120
        %v1134 = vadd.f32 %v1052, %v1121
        %1135 = vset.pattern.permute.xlu0 7
        %1136 = vperm.xlu0 %1135, %v528
        %v1137 = vpop.permute.xlu0 %1136
        %1139 = vset.pattern.permute.xlu0 7
        %1140 = vperm.xlu0 %1139, %v529
        %v1141 = vpop.permute.xlu0 %1140
        %1143 = vset.pattern.permute.xlu0 7
        %1144 = vperm.xlu0 %1143, %v530
        %v1145 = vpop.permute.xlu0 %1144
        %1147 = vset.pattern.permute.xlu0 7
        %1148 = vperm.xlu0 %1147, %v531
        %v1149 = vpop.permute.xlu0 %1148
        %1151 = vset.pattern.permute.xlu0 7
        %1152 = vperm.xlu0 %1151, %v532
        %v1153 = vpop.permute.xlu0 %1152
        %1155 = vset.pattern.permute.xlu0 7
        %1156 = vperm.xlu0 %1155, %v533
        %v1157 = vpop.permute.xlu0 %1156
        %1159 = vset.pattern.permute.xlu0 7
        %1160 = vperm.xlu0 %1159, %v534
        %v1161 = vpop.permute.xlu0 %1160
        %1163 = vset.pattern.permute.xlu0 7
        %1164 = vperm.xlu0 %1163, %v535
        %v1165 = vpop.permute.xlu0 %1164
        %1167 = vset.pattern.permute.xlu0 7
        %1168 = vperm.xlu0 %1167, %v536
        %v1169 = vpop.permute.xlu0 %1168
        %1171 = vset.pattern.permute.xlu0 7
        %1172 = vperm.xlu0 %1171, %v537
        %v1173 = vpop.permute.xlu0 %1172
        %1175 = vset.pattern.permute.xlu0 7
        %1176 = vperm.xlu0 %1175, %v538
        %v1177 = vpop.permute.xlu0 %1176
        %1179 = vset.pattern.permute.xlu0 7
        %1180 = vperm.xlu0 %1179, %v539
        %v1181 = vpop.permute.xlu0 %1180
        %1183 = vset.pattern.permute.xlu0 7
        %1184 = vperm.xlu0 %1183, %v540
        %v1185 = vpop.permute.xlu0 %1184
        %v1187 = vlaneseq
        %v1188 = vshrl.u32 %v1187, 7
        %v1189 = vsub.s32 7, %v1188
        %v1190 = vrot.slane %v260, %v1189
        %v1191 = vmul.f32 %v1137, %v1190
        %v1192 = vmul.f32 %v1141, %v1190
        %v1193 = vmul.f32 %v1145, %v1190
        %v1194 = vmul.f32 %v1149, %v1190
        %v1195 = vmul.f32 %v1153, %v1190
        %v1196 = vmul.f32 %v1157, %v1190
        %v1197 = vmul.f32 %v1161, %v1190
        %v1198 = vmul.f32 %v1165, %v1190
        %v1199 = vmul.f32 %v1169, %v1190
        %v1200 = vmul.f32 %v1173, %v1190
        %v1201 = vmul.f32 %v1177, %v1190
        %v1202 = vmul.f32 %v1181, %v1190
        %v1203 = vmul.f32 %v1185, %v1190
        %v1204 = vadd.f32 %v1122, %v1191
        %v1205 = vadd.f32 %v1123, %v1192
        %v1206 = vadd.f32 %v1124, %v1193
        %v1207 = vadd.f32 %v1125, %v1194
        %v1208 = vadd.f32 %v1126, %v1195
        %v1209 = vadd.f32 %v1127, %v1196
        %v1210 = vadd.f32 %v1128, %v1197
        %v1211 = vadd.f32 %v1129, %v1198
        %v1212 = vadd.f32 %v1130, %v1199
        %v1213 = vadd.f32 %v1131, %v1200
        %v1214 = vadd.f32 %v1132, %v1201
        %v1215 = vadd.f32 %v1133, %v1202
        %v1216 = vadd.f32 %v1134, %v1203
        %1217 = vset.pattern.permute.xlu0 8
        %1218 = vperm.xlu0 %1217, %v528
        %v1219 = vpop.permute.xlu0 %1218
        %1221 = vset.pattern.permute.xlu0 8
        %1222 = vperm.xlu0 %1221, %v529
        %v1223 = vpop.permute.xlu0 %1222
        %1225 = vset.pattern.permute.xlu0 8
        %1226 = vperm.xlu0 %1225, %v530
        %v1227 = vpop.permute.xlu0 %1226
        %1229 = vset.pattern.permute.xlu0 8
        %1230 = vperm.xlu0 %1229, %v531
        %v1231 = vpop.permute.xlu0 %1230
        %1233 = vset.pattern.permute.xlu0 8
        %1234 = vperm.xlu0 %1233, %v532
        %v1235 = vpop.permute.xlu0 %1234
        %1237 = vset.pattern.permute.xlu0 8
        %1238 = vperm.xlu0 %1237, %v533
        %v1239 = vpop.permute.xlu0 %1238
        %1241 = vset.pattern.permute.xlu0 8
        %1242 = vperm.xlu0 %1241, %v534
        %v1243 = vpop.permute.xlu0 %1242
        %1245 = vset.pattern.permute.xlu0 8
        %1246 = vperm.xlu0 %1245, %v535
        %v1247 = vpop.permute.xlu0 %1246
        %1249 = vset.pattern.permute.xlu0 8
        %1250 = vperm.xlu0 %1249, %v536
        %v1251 = vpop.permute.xlu0 %1250
        %1253 = vset.pattern.permute.xlu0 8
        %1254 = vperm.xlu0 %1253, %v537
        %v1255 = vpop.permute.xlu0 %1254
        %1257 = vset.pattern.permute.xlu0 8
        %1258 = vperm.xlu0 %1257, %v538
        %v1259 = vpop.permute.xlu0 %1258
        %1261 = vset.pattern.permute.xlu0 8
        %1262 = vperm.xlu0 %1261, %v539
        %v1263 = vpop.permute.xlu0 %1262
        %1265 = vset.pattern.permute.xlu0 8
        %1266 = vperm.xlu0 %1265, %v540
        %v1267 = vpop.permute.xlu0 %1266
        %v1269 = vlaneseq
        %v1270 = vshrl.u32 %v1269, 7
        %v1271 = vsub.s32 0, %v1270
        %v1272 = vrot.slane %v261, %v1271
        %v1273 = vmul.f32 %v1219, %v1272
        %v1274 = vmul.f32 %v1223, %v1272
        %v1275 = vmul.f32 %v1227, %v1272
        %v1276 = vmul.f32 %v1231, %v1272
        %v1277 = vmul.f32 %v1235, %v1272
        %v1278 = vmul.f32 %v1239, %v1272
        %v1279 = vmul.f32 %v1243, %v1272
        %v1280 = vmul.f32 %v1247, %v1272
        %v1281 = vmul.f32 %v1251, %v1272
        %v1282 = vmul.f32 %v1255, %v1272
        %v1283 = vmul.f32 %v1259, %v1272
        %v1284 = vmul.f32 %v1263, %v1272
        %v1285 = vmul.f32 %v1267, %v1272
        %v1286 = vadd.f32 %v1204, %v1273
        %v1287 = vadd.f32 %v1205, %v1274
        %v1288 = vadd.f32 %v1206, %v1275
        %v1289 = vadd.f32 %v1207, %v1276
        %v1290 = vadd.f32 %v1208, %v1277
        %v1291 = vadd.f32 %v1209, %v1278
        %v1292 = vadd.f32 %v1210, %v1279
        %v1293 = vadd.f32 %v1211, %v1280
        %v1294 = vadd.f32 %v1212, %v1281
        %v1295 = vadd.f32 %v1213, %v1282
        %v1296 = vadd.f32 %v1214, %v1283
        %v1297 = vadd.f32 %v1215, %v1284
        %v1298 = vadd.f32 %v1216, %v1285
        %vm1299 = vcmask 31744
        %1300 = vst.msk [vmem:[%s226] sm:$0xff] %vm1299, %v1286
        %1301 = vst.msk [vmem:[%s226 + $0x8] sm:$0xff] %vm1299, %v1287
        %1302 = vst.msk [vmem:[%s226 + $0x10] sm:$0xff] %vm1299, %v1288
        %1303 = vst.msk [vmem:[%s226 + $0x18] sm:$0xff] %vm1299, %v1289
        %1304 = vst.msk [vmem:[%s226 + $0x20] sm:$0xff] %vm1299, %v1290
        %1305 = vst.msk [vmem:[%s226 + $0x28] sm:$0xff] %vm1299, %v1291
        %1306 = vst.msk [vmem:[%s226 + $0x30] sm:$0xff] %vm1299, %v1292
        %1307 = vst.msk [vmem:[%s226 + $0x38] sm:$0xff] %vm1299, %v1293
        %1308 = vst.msk [vmem:[%s226 + $0x40] sm:$0xff] %vm1299, %v1294
        %1309 = vst.msk [vmem:[%s226 + $0x48] sm:$0xff] %vm1299, %v1295
        %1310 = vst.msk [vmem:[%s226 + $0x50] sm:$0xff] %vm1299, %v1296
        %1311 = vst.msk [vmem:[%s226 + $0x58] sm:$0xff] %vm1299, %v1297
        %1312 = vst.msk [vmem:[%s226 + $0x60] sm:$0xff] %vm1299, %v1298
        %s1313 = sand.u32 %s134, 1
        %s1314 = sand.u32 %s134, 1
        %s1315 = smul.addr %s1314, 104
        %s1316 = scalar_lea.vmem [#allocation2], %s1315
        // Predicated region
        $region41: #{tpu_custom_call.1} parent=39 // pred_check
          %p1317 = pneg %p144
        $region42: #{tpu_custom_call.1} parent=39 // pred_check_branch
          %1319 = sbr.rel (%p1317) target = $region44
        $region43: #{tpu_custom_call.1} parent=39 // pred_region
          %s1320 = smul.u32 13, %s16
          %s1321 = ssub.s32 25, %s1320
          %p1322 = scmp.lt.s32.totalorder %s1321, 13
          %s1323 = scalar_select %p1322, %s1321, 13
          %s1324 = smul.u32 128, %s1323
          %p1325 = scmp.ne.s32.totalorder 0, %s1324
          %s1326 = smul.addr %s1320, 8
          %s1327 = scalar_lea.vmem %s5, %s1326
          // Predicated region
          $region45: #{tpu_custom_call.1} parent=43 // pred_check
            %p1328 = pneg %p1325
          $region46: #{tpu_custom_call.1} parent=43 // pred_check_branch
            %1330 = sbr.rel (%p1328) target = $region48
          $region47: #{tpu_custom_call.1} parent=43 // pred_region
            // Predicated region
            $region49: #{tpu_custom_call.1} parent=47 // pred_check
              _
            $region50: #{tpu_custom_call.1} parent=47 // pred_check_branch
              %1332 = sbr.rel (0) target = $region52
            $region51: #{tpu_custom_call.1} parent=47 // pred_region
              // Predicated region
              $region71: #{tpu_custom_call.1} parent=51 // pred_check
                _
              $region72: #{tpu_custom_call.1} parent=51 // pred_check_branch
                %1407 = sbr.rel (0) target = $region74
              $region73: #{tpu_custom_call.1} parent=51 // pred_region
                %s1408 = sdiv.u32.pop %s1323, 13
                %s1409 = srem.u32.pop %s1323, 13
                // While loop
                $region75: #{tpu_custom_call.1} parent=73 // loop_pre_header
                  _
                $region76: #{tpu_custom_call.1} parent=73 // loop_header
                  %s1411 = sphi 0, %s1413
                  %p1412 = scmp.ge.s32.totalorder %s1411, %s1408
                  %s1416 = sphi 0, %s1447
                  %s1417 = sphi %s1316, %s1450
                  %s1418 = sphi %s1327, %s1451
                $region77: #{tpu_custom_call.1} parent=73 // loop_header_branch
                  %1415 = sbr.rel (%p1412) target = $region81
                $region78: #{tpu_custom_call.1} parent=73 // loop_body
                  %v1419 = vld [vmem:[%s1417] sm:$0xff]
                  %1420 = vst [vmem:[%s1418] sm:$0xff] %v1419
                  %v1421 = vld [vmem:[%s1417 + $0x8] sm:$0xff]
                  %1422 = vst [vmem:[%s1418 + $0x8] sm:$0xff] %v1421
                  %v1423 = vld [vmem:[%s1417 + $0x10] sm:$0xff]
                  %1424 = vst [vmem:[%s1418 + $0x10] sm:$0xff] %v1423
                  %v1425 = vld [vmem:[%s1417 + $0x18] sm:$0xff]
                  %1426 = vst [vmem:[%s1418 + $0x18] sm:$0xff] %v1425
                  %v1427 = vld [vmem:[%s1417 + $0x20] sm:$0xff]
                  %1428 = vst [vmem:[%s1418 + $0x20] sm:$0xff] %v1427
                  %v1429 = vld [vmem:[%s1417 + $0x28] sm:$0xff]
                  %1430 = vst [vmem:[%s1418 + $0x28] sm:$0xff] %v1429
                  %v1431 = vld [vmem:[%s1417 + $0x30] sm:$0xff]
                  %1432 = vst [vmem:[%s1418 + $0x30] sm:$0xff] %v1431
                  %v1433 = vld [vmem:[%s1417 + $0x38] sm:$0xff]
                  %1434 = vst [vmem:[%s1418 + $0x38] sm:$0xff] %v1433
                  %v1435 = vld [vmem:[%s1417 + $0x40] sm:$0xff]
                  %1436 = vst [vmem:[%s1418 + $0x40] sm:$0xff] %v1435
                  %v1437 = vld [vmem:[%s1417 + $0x48] sm:$0xff]
                  %1438 = vst [vmem:[%s1418 + $0x48] sm:$0xff] %v1437
                  %v1439 = vld [vmem:[%s1417 + $0x50] sm:$0xff]
                  %1440 = vst [vmem:[%s1418 + $0x50] sm:$0xff] %v1439
                  %v1441 = vld [vmem:[%s1417 + $0x58] sm:$0xff]
                  %1442 = vst [vmem:[%s1418 + $0x58] sm:$0xff] %v1441
                  %v1443 = vld [vmem:[%s1417 + $0x60] sm:$0xff]
                  %1444 = vst [vmem:[%s1418 + $0x60] sm:$0xff] %v1443
                  %s1445 = sadd.s32 1, %s1416
                  %p1446 = scmp.ge.s32.totalorder %s1445, %s1408
                  %s1447 = scalar_select %p1446, 0, %s1445
                  %s1448 = smul.u32 %s1447, 104
                  %s1449 = smul.u32 %s1447, 104
                  %s1450 = scalar_lea.vmem %s1316, %s1448 [#allocation2]
                  %s1451 = scalar_lea.vmem %s1327, %s1449
                $region79: #{tpu_custom_call.1} parent=73 // loop_footer
                  %s1413 = sadd.s32 %s1411, 1
                $region80: #{tpu_custom_call.1} parent=73 // loop_footer_branch
                  %1410 = sbr.rel target = $region76
                $region81: #{tpu_custom_call.1} parent=73 // loop_exit
                  _
                %s1452 = sdiv.u32.pop %s1323, 13
                %s1453 = srem.u32.pop %s1323, 13
                %s1454 = smul.u32 %s1452, 13
                %s1455 = smul.u32 8, %s1454
                %s1456 = scalar_lea.vmem %s1316, %s1455 [#allocation2]
                %s1457 = smul.u32 8, %s1454
                %s1458 = scalar_lea.vmem %s1327, %s1457
                // While loop
                $region82: #{tpu_custom_call.1} parent=73 // loop_pre_header
                  _
                $region83: #{tpu_custom_call.1} parent=73 // loop_header
                  %s1460 = sphi 0, %s1462
                  %p1461 = scmp.ge.s32.totalorder %s1460, %s1453
                  %s1465 = sphi 0, %s1472
                  %s1466 = sphi %s1456, %s1475
                  %s1467 = sphi %s1458, %s1476
                $region84: #{tpu_custom_call.1} parent=73 // loop_header_branch
                  %1464 = sbr.rel (%p1461) target = $region88
                $region85: #{tpu_custom_call.1} parent=73 // loop_body
                  %v1468 = vld [vmem:[%s1466] sm:$0xff]
                  %1469 = vst [vmem:[%s1467] sm:$0xff] %v1468
                  %s1470 = sadd.s32 1, %s1465
                  %p1471 = scmp.ge.s32.totalorder %s1470, %s1453
                  %s1472 = scalar_select %p1471, 0, %s1470
                  %s1473 = smul.u32 %s1472, 8
                  %s1474 = smul.u32 %s1472, 8
                  %s1475 = scalar_lea.vmem %s1456, %s1473 [#allocation2]
                  %s1476 = scalar_lea.vmem %s1458, %s1474
                $region86: #{tpu_custom_call.1} parent=73 // loop_footer
                  %s1462 = sadd.s32 %s1460, 1
                $region87: #{tpu_custom_call.1} parent=73 // loop_footer_branch
                  %1459 = sbr.rel target = $region83
                $region88: #{tpu_custom_call.1} parent=73 // loop_exit
                  _
              $region74: #{tpu_custom_call.1} parent=51 // pred_fallthru
                _
              // Predicated region
              $region89: #{tpu_custom_call.1} parent=51 // pred_check
                _
              $region90: #{tpu_custom_call.1} parent=51 // pred_check_branch
                %1478 = sbr.rel target = $region92
              $region91: #{tpu_custom_call.1} parent=51 // pred_region
                _
              $region92: #{tpu_custom_call.1} parent=51 // pred_fallthru
                _
            $region52: #{tpu_custom_call.1} parent=47 // pred_fallthru
              _
            // Predicated region
            $region53: #{tpu_custom_call.1} parent=47 // pred_check
              _
            $region54: #{tpu_custom_call.1} parent=47 // pred_check_branch
              %1334 = sbr.rel target = $region56
            $region55: #{tpu_custom_call.1} parent=47 // pred_region
              %s1336 = ssub.s32 256, 1
              %s1337 = sdiv.u32.pop %s1323, 13
              %s1338 = srem.u32.pop %s1323, 13
              // While loop
              $region57: #{tpu_custom_call.1} parent=55 // loop_pre_header
                _
              $region58: #{tpu_custom_call.1} parent=55 // loop_header
                %s1340 = sphi 0, %s1342
                %p1341 = scmp.ge.s32.totalorder %s1340, %s1337
                %s1345 = sphi 0, %s1376
                %s1346 = sphi %s1316, %s1379
                %s1347 = sphi %s1327, %s1380
              $region59: #{tpu_custom_call.1} parent=55 // loop_header_branch
                %1344 = sbr.rel (%p1341) target = $region63
              $region60: #{tpu_custom_call.1} parent=55 // loop_body
                %v1348 = vld [vmem:[%s1346] sm:%s1336]
                %1349 = vst [vmem:[%s1347] sm:%s1336] %v1348
                %v1350 = vld [vmem:[%s1346 + $0x8] sm:%s1336]
                %1351 = vst [vmem:[%s1347 + $0x8] sm:%s1336] %v1350
                %v1352 = vld [vmem:[%s1346 + $0x10] sm:%s1336]
                %1353 = vst [vmem:[%s1347 + $0x10] sm:%s1336] %v1352
                %v1354 = vld [vmem:[%s1346 + $0x18] sm:%s1336]
                %1355 = vst [vmem:[%s1347 + $0x18] sm:%s1336] %v1354
                %v1356 = vld [vmem:[%s1346 + $0x20] sm:%s1336]
                %1357 = vst [vmem:[%s1347 + $0x20] sm:%s1336] %v1356
                %v1358 = vld [vmem:[%s1346 + $0x28] sm:%s1336]
                %1359 = vst [vmem:[%s1347 + $0x28] sm:%s1336] %v1358
                %v1360 = vld [vmem:[%s1346 + $0x30] sm:%s1336]
                %1361 = vst [vmem:[%s1347 + $0x30] sm:%s1336] %v1360
                %v1362 = vld [vmem:[%s1346 + $0x38] sm:%s1336]
                %1363 = vst [vmem:[%s1347 + $0x38] sm:%s1336] %v1362
                %v1364 = vld [vmem:[%s1346 + $0x40] sm:%s1336]
                %1365 = vst [vmem:[%s1347 + $0x40] sm:%s1336] %v1364
                %v1366 = vld [vmem:[%s1346 + $0x48] sm:%s1336]
                %1367 = vst [vmem:[%s1347 + $0x48] sm:%s1336] %v1366
                %v1368 = vld [vmem:[%s1346 + $0x50] sm:%s1336]
                %1369 = vst [vmem:[%s1347 + $0x50] sm:%s1336] %v1368
                %v1370 = vld [vmem:[%s1346 + $0x58] sm:%s1336]
                %1371 = vst [vmem:[%s1347 + $0x58] sm:%s1336] %v1370
                %v1372 = vld [vmem:[%s1346 + $0x60] sm:%s1336]
                %1373 = vst [vmem:[%s1347 + $0x60] sm:%s1336] %v1372
                %s1374 = sadd.s32 1, %s1345
                %p1375 = scmp.ge.s32.totalorder %s1374, %s1337
                %s1376 = scalar_select %p1375, 0, %s1374
                %s1377 = smul.u32 %s1376, 104
                %s1378 = smul.u32 %s1376, 104
                %s1379 = scalar_lea.vmem %s1316, %s1377 [#allocation2]
                %s1380 = scalar_lea.vmem %s1327, %s1378
              $region61: #{tpu_custom_call.1} parent=55 // loop_footer
                %s1342 = sadd.s32 %s1340, 1
              $region62: #{tpu_custom_call.1} parent=55 // loop_footer_branch
                %1339 = sbr.rel target = $region58
              $region63: #{tpu_custom_call.1} parent=55 // loop_exit
                _
              %s1381 = sdiv.u32.pop %s1323, 13
              %s1382 = srem.u32.pop %s1323, 13
              %s1383 = smul.u32 %s1381, 13
              %s1384 = smul.u32 8, %s1383
              %s1385 = scalar_lea.vmem %s1316, %s1384 [#allocation2]
              %s1386 = smul.u32 8, %s1383
              %s1387 = scalar_lea.vmem %s1327, %s1386
              // While loop
              $region64: #{tpu_custom_call.1} parent=55 // loop_pre_header
                _
              $region65: #{tpu_custom_call.1} parent=55 // loop_header
                %s1389 = sphi 0, %s1391
                %p1390 = scmp.ge.s32.totalorder %s1389, %s1382
                %s1394 = sphi 0, %s1401
                %s1395 = sphi %s1385, %s1404
                %s1396 = sphi %s1387, %s1405
              $region66: #{tpu_custom_call.1} parent=55 // loop_header_branch
                %1393 = sbr.rel (%p1390) target = $region70
              $region67: #{tpu_custom_call.1} parent=55 // loop_body
                %v1397 = vld [vmem:[%s1395] sm:%s1336]
                %1398 = vst [vmem:[%s1396] sm:%s1336] %v1397
                %s1399 = sadd.s32 1, %s1394
                %p1400 = scmp.ge.s32.totalorder %s1399, %s1382
                %s1401 = scalar_select %p1400, 0, %s1399
                %s1402 = smul.u32 %s1401, 8
                %s1403 = smul.u32 %s1401, 8
                %s1404 = scalar_lea.vmem %s1385, %s1402 [#allocation2]
                %s1405 = scalar_lea.vmem %s1387, %s1403
              $region68: #{tpu_custom_call.1} parent=55 // loop_footer
                %s1391 = sadd.s32 %s1389, 1
              $region69: #{tpu_custom_call.1} parent=55 // loop_footer_branch
                %1388 = sbr.rel target = $region65
              $region70: #{tpu_custom_call.1} parent=55 // loop_exit
                _
            $region56: #{tpu_custom_call.1} parent=47 // pred_fallthru
              _
          $region48: #{tpu_custom_call.1} parent=43 // pred_fallthru
            _
          %1479 = vnop
        $region44: #{tpu_custom_call.1} parent=39 // pred_fallthru
          _
      $region40: #{tpu_custom_call.1} parent=5 // pred_fallthru
        _
      %p1480 = scmp.le.s32.totalorder 2, %s11
      // Predicated region
      $region93: #{tpu_custom_call.1} parent=5 // pred_check
        %p1481 = pneg %p1480
      $region94: #{tpu_custom_call.1} parent=5 // pred_check_branch
        %1483 = sbr.rel (%p1481) target = $region96
      $region95: #{tpu_custom_call.1} parent=5 // pred_region
        %s1484 = ssub.s32 %s11, 2
        // Predicated region
        $region97: #{tpu_custom_call.1} parent=95 // pred_check
          %p1485 = pneg %p150
        $region98: #{tpu_custom_call.1} parent=95 // pred_check_branch
          %1487 = sbr.rel (%p1485) target = $region100
        $region99: #{tpu_custom_call.1} parent=95 // pred_region
          %s1488 = sand.u32 %s135, 1
          %s1489 = sand.u32 %s135, 1
          %s1490 = smul.addr %s1489, 104
          %s1491 = scalar_lea.vmem [#allocation2], %s1490
        $region100: #{tpu_custom_call.1} parent=95 // pred_fallthru
          _
      $region96: #{tpu_custom_call.1} parent=5 // pred_fallthru
        _
    $region6: #{tpu_custom_call.1} parent=1 // loop_footer
      %s15 = sadd.s32 1, %s11
    $region7: #{tpu_custom_call.1} parent=1 // loop_footer_branch
      %10 = sbr.rel target = $region3
    $region8: #{tpu_custom_call.1} parent=1 // loop_exit
      _

</llo_original>
